<compile_context>
chip_gen: v7x
topology: tpu7x:2x2x1
jax: 0.10.0
libtpu: 0.0.40
codegen_flags: <defaults>
</compile_context>

<pallas_src>
import jax
import jax.numpy as jnp
from jax.experimental import pallas as pl
from jax.experimental.pallas import tpu as pltpu


def _round_up(n: int, m: int) -> int:
    return (n + m - 1) // m * m


def _cdiv(a: int, b: int) -> int:
    return (a + b - 1) // b


def value_net_kernel(x_ref, w1_ref, b1_ref, w2_ref, b2_ref, o_ref):
    # fc1 (row-packed): (TBr, R*S) @ (R*S, R*H) on the MXU, f32 accumulation.
    h = jnp.dot(x_ref[...], w1_ref[...], preferred_element_type=jnp.float32)
    # Bias + ReLU on the VPU; b1 is tiled R times to match the packed layout.
    h = jnp.maximum(h + b1_ref[...], 0.0)
    # fc2 folded into a block "selection" matrix: (TBr, R*H) @ (R*H, R).
    # Row-major, each output row holds the R scalar values of R input rows.
    y = jnp.dot(h, w2_ref[...], preferred_element_type=jnp.float32)
    # b2 is a scalar living in SMEM.
    o_ref[...] = (y + b2_ref[0, 0]).astype(o_ref.dtype)


def value_net_forward(x, w1, b1, w2, b2, *, block_rows=16384):
    """x: (B, state_dim). w1: (state_dim, hidden). b1: (hidden,).
    w2: (hidden, 1). b2: (1,).  Returns (B, 1) float32.

    The kernel computes in x.dtype on the MXU (f32 accumulation).  Pass bf16 x
    only if it already lives in HBM as bf16 -- no cast is done here.
    """
    B, S = x.shape
    H = w1.shape[1]
    assert B >= 1
    assert w1.shape == (S, H) and b1.shape == (H,)
    assert w2.shape == (H, 1) and b2.shape == (1,)

    # ---- row-packing factor R (lane-dense x blocks) ------------------------
    R = max(1, 128 // S) if S <= 128 else 1
    # Cap the block-diagonal fc1 weight at ~2 MiB (stays VMEM-resident).
    while R > 1 and (R * S) * (R * H) * 4 > (2 << 20):
        R //= 2
    W = R * S

    # ---- one-time packed weights (tiny, built in the wrapper) --------------
    eye = jnp.eye(R, dtype=jnp.float32)
    # W1bd[a*S + k, c*H + j] = w1[k, j] if a == c else 0
    w1bd = jnp.einsum("ac,kj->akcj", eye, w1.astype(jnp.float32))
    w1bd = w1bd.reshape(W, R * H).astype(x.dtype)
    # b1 tiled R times: b1t[0, c*H + j] = b1[j]
    b1t = jnp.tile(b1.astype(jnp.float32), R).reshape(1, R * H)
    # W2sel[c*H + j, d] = w2[j, 0] if c == d else 0   (fc2 folded per segment)
    w2sel = jnp.einsum("cd,j->cjd", eye, w2[:, 0].astype(jnp.float32))
    w2sel = w2sel.reshape(R * H, R)
    b2s = b2.reshape(1, 1).astype(jnp.float32)

    # ---- pack x: (B, S) -> (Br, R*S); pure row-major reinterpretation ------
    Bp = _round_up(B, R)
    xr = x if Bp == B else jnp.pad(x, ((0, Bp - B), (0, 0)))  # only if B % R != 0
    Br = Bp // R
    xr = xr.reshape(Br, W)

    # ---- batch tiling (packed rows) ----------------------------------------
    TBr = min(max(8, (block_rows // R) // 8 * 8), _round_up(Br, 8))
    if Br >= 16:                     # keep >= 2 grid steps for v7x megacore
        TBr = min(TBr, _round_up(_cdiv(Br, 2), 8))
    TBr = max(TBr, 8)
    if Br < TBr:                     # tiny input: make the single block in-bounds
        xr = jnp.pad(xr, ((0, TBr - Br), (0, 0)))
    grid = (_cdiv(Br, TBr),)
    Br_pad = grid[0] * TBr           # output rows: writes are always in-bounds

    itemsize = jnp.dtype(x.dtype).itemsize
    cost = pl.CostEstimate(
        flops=Br_pad * (2 * W * R * H + 2 * R * H * R + 3 * R * H),
        transcendentals=0,
        bytes_accessed=(Br_pad * W * itemsize          # x stream (dominant)
                        + W * R * H * itemsize         # block-diag fc1 weight
                        + R * H * (R + 1) * 4 + 4      # w2sel, b1 tile, b2
                        + Br_pad * R * 4),             # output
    )

    out = pl.pallas_call(
        value_net_kernel,
        out_shape=jax.ShapeDtypeStruct((Br_pad, R), jnp.float32),
        grid=grid,
        in_specs=[
            pl.BlockSpec((TBr, W), lambda i: (i, 0)),            # x tile (streamed)
            pl.BlockSpec((W, R * H), lambda i: (0, 0)),          # fc1 block-diag (resident)
            pl.BlockSpec((1, R * H), lambda i: (0, 0)),          # b1 tile (resident)
            pl.BlockSpec((R * H, R), lambda i: (0, 0)),          # fc2 folded (resident)
            pl.BlockSpec(memory_space=pltpu.MemorySpace.SMEM),   # b2 scalar
        ],
        out_specs=pl.BlockSpec((TBr, R), lambda i: (i, 0)),
        compiler_params=pltpu.CompilerParams(
            dimension_semantics=("parallel",),       # megacore on v7x
            vmem_limit_bytes=32 * 1024 * 1024,       # safe on v5e/v6e/v7x
        ),
        cost_estimate=cost,
    )(xr, w1bd, b1t, w2sel, b2s)

    # (Br_pad, R) row-major is exactly the per-row value column; free reshape,
    # then drop padded / garbage rows.
    return out.reshape(-1, 1)[:B]


def init_params(key, state_dim, hidden_dim):
    """Deterministic init mimicking torch.nn.Linear (U(-1/sqrt(fan_in), +1/sqrt(fan_in)))."""
    k1, k2, k3, k4 = jax.random.split(key, 4)
    bound1 = 1.0 / jnp.sqrt(state_dim)
    bound2 = 1.0 / jnp.sqrt(hidden_dim)
    # Stored already transposed: (in, out)
    w1 = jax.random.uniform(k1, (state_dim, hidden_dim), jnp.float32, -bound1, bound1)
    b1 = jax.random.uniform(k2, (hidden_dim,), jnp.float32, -bound1, bound1)
    w2 = jax.random.uniform(k3, (hidden_dim, 1), jnp.float32, -bound2, bound2)
    b2 = jax.random.uniform(k4, (1,), jnp.float32, -bound2, bound2)
    return w1, b1, w2, b2


if __name__ == "__main__":
    key = jax.random.PRNGKey(0)
    state_dim, hidden_dim = 16, 32
    k_x, k_p = jax.random.split(key)
    w1, b1, w2, b2 = init_params(k_p, state_dim, hidden_dim)

    fwd = jax.jit(value_net_forward)

    # Exercise: multi-tile with a partial last block (200), a tiny single-tile
    # batch (8), and a batch that is not a multiple of the packing factor (5).
    for batch in (200, 8, 5):
        x = jax.random.normal(jax.random.fold_in(k_x, batch),
                              (batch, state_dim), jnp.float32)
        out = jax.block_until_ready(fwd(x, w1, b1, w2, b2))
        # Reference in plain JAX (same math as the PyTorch forward).
        ref = jnp.maximum(x @ w1 + b1, 0.0) @ w2 + b2
        assert out.shape == (batch, 1)
        err = float(jnp.max(jnp.abs(out - ref)))
        assert jnp.allclose(out, ref, atol=2e-4, rtol=2e-4), (batch, err)

    print("KERNEL_OK")
</pallas_src>

<mosaic_0001>
module attributes {stable_mosaic.version = 11 : i64} {
  func.func @value_net_kernel(%arg0: i32, %arg1: memref<16x128xf32, #tpu.memory_space<vmem>>, %arg2: memref<128x256xf32, #tpu.memory_space<vmem>>, %arg3: memref<1x256xf32, #tpu.memory_space<vmem>>, %arg4: memref<256x8xf32, #tpu.memory_space<vmem>>, %arg5: memref<1x1xf32, #tpu.memory_space<smem>>, %arg6: memref<16x8xf32, #tpu.memory_space<vmem>>) attributes {dimension_semantics = [#tpu.dimension_semantics<parallel>], iteration_bounds = array<i64: 2>, scalar_prefetch = 0 : i64, scratch_operands = 0 : i64, tpu.core_type = #tpu.core_type<tc>, window_params = [{transform_indices = @transform_0, window_bounds = array<i64: 16, 128>}, {pipeline_mode = #tpu.pipeline_mode<synchronous>, transform_indices = @transform_1, window_bounds = array<i64: 128, 256>}, {pipeline_mode = #tpu.pipeline_mode<synchronous>, transform_indices = @transform_2, window_bounds = array<i64: 1, 256>}, {pipeline_mode = #tpu.pipeline_mode<synchronous>, transform_indices = @transform_3, window_bounds = array<i64: 256, 8>}, {transform_indices = @transform_4, window_bounds = array<i64: 1, 1>}, {transform_indices = @transform_5, window_bounds = array<i64: 16, 8>}]} {
    %c0 = arith.constant 0 : index
    %c0_0 = arith.constant 0 : index
    %0 = vector.load %arg1[%c0, %c0_0] : memref<16x128xf32, #tpu.memory_space<vmem>>, vector<16x128xf32>
    %c0_1 = arith.constant 0 : index
    %c0_2 = arith.constant 0 : index
    %1 = vector.load %arg2[%c0_1, %c0_2] : memref<128x256xf32, #tpu.memory_space<vmem>>, vector<128x256xf32>
    %cst = arith.constant dense<0.000000e+00> : vector<16x256xf32>
    %2 = tpu.matmul %0, %1, %cst {dimension_numbers = #tpu.dot_dimension_numbers<[1], [0], [0], [1], [0, 0, 1, 1], [], []>} : vector<16x128xf32>, vector<128x256xf32>, vector<16x256xf32> -> vector<16x256xf32>
    %c0_3 = arith.constant 0 : index
    %c0_4 = arith.constant 0 : index
    %3 = vector.load %arg3[%c0_3, %c0_4] : memref<1x256xf32, #tpu.memory_space<vmem>>, vector<1x256xf32>
    %4 = vector.broadcast %3 : vector<1x256xf32> to vector<16x256xf32>
    %5 = arith.addf %2, %4 : vector<16x256xf32>
    %cst_5 = arith.constant 0.000000e+00 : f32
    %6 = vector.broadcast %cst_5 : f32 to vector<16x256xf32>
    %7 = arith.maximumf %5, %6 : vector<16x256xf32>
    %c0_6 = arith.constant 0 : index
    %c0_7 = arith.constant 0 : index
    %8 = vector.load %arg4[%c0_6, %c0_7] : memref<256x8xf32, #tpu.memory_space<vmem>>, vector<256x8xf32>
    %cst_8 = arith.constant dense<0.000000e+00> : vector<16x8xf32>
    %9 = tpu.matmul %7, %8, %cst_8 {dimension_numbers = #tpu.dot_dimension_numbers<[1], [0], [0], [1], [0, 0, 1, 1], [], []>} : vector<16x256xf32>, vector<256x8xf32>, vector<16x8xf32> -> vector<16x8xf32>
    %c0_9 = arith.constant 0 : index
    %c0_10 = arith.constant 0 : index
    %10 = memref.load %arg5[%c0_9, %c0_10] : memref<1x1xf32, #tpu.memory_space<smem>>
    %11 = vector.broadcast %10 : f32 to vector<16x8xf32>
    %12 = arith.addf %9, %11 : vector<16x8xf32>
    %c0_11 = arith.constant 0 : index
    %c0_12 = arith.constant 0 : index
    %13 = vector.load %arg6[%c0_11, %c0_12] : memref<16x8xf32, #tpu.memory_space<vmem>>, vector<16x8xf32>
    tpu.vector_store %arg6[%c0_11, %c0_12], %12 {strides = array<i32>} : memref<16x8xf32, #tpu.memory_space<vmem>>, vector<16x8xf32>,
    return
  }
  func.func @transform_0(%arg0: i32) -> (i32, i32) {
    %c0_i32 = arith.constant 0 : i32
    %c0_i32_0 = arith.constant 0 : i32
    return %arg0, %c0_i32 : i32, i32
  }
  func.func @transform_1(%arg0: i32) -> (i32, i32) {
    %c0_i32 = arith.constant 0 : i32
    %c0_i32_0 = arith.constant 0 : i32
    %c0_i32_1 = arith.constant 0 : i32
    return %c0_i32, %c0_i32_0 : i32, i32
  }
  func.func @transform_2(%arg0: i32) -> (i32, i32) {
    %c0_i32 = arith.constant 0 : i32
    %c0_i32_0 = arith.constant 0 : i32
    %c0_i32_1 = arith.constant 0 : i32
    return %c0_i32, %c0_i32_0 : i32, i32
  }
  func.func @transform_3(%arg0: i32) -> (i32, i32) {
    %c0_i32 = arith.constant 0 : i32
    %c0_i32_0 = arith.constant 0 : i32
    %c0_i32_1 = arith.constant 0 : i32
    return %c0_i32, %c0_i32_0 : i32, i32
  }
  func.func @transform_4(%arg0: i32) -> (i32, i32) {
    %c0_i32 = arith.constant 0 : i32
    %c0_i32_0 = arith.constant 0 : i32
    %c0_i32_1 = arith.constant 0 : i32
    return %c0_i32, %c0_i32_0 : i32, i32
  }
  func.func @transform_5(%arg0: i32) -> (i32, i32) {
    %c0_i32 = arith.constant 0 : i32
    %c0_i32_0 = arith.constant 0 : i32
    return %arg0, %c0_i32 : i32, i32
  }
}

</mosaic_0001>

<llo_original>
// kernel: tile.8
$region0: #{tile.8}
  #allocation0 [shape = 's32[1]{0}', space=sflag, size = 0x4, scoped, tag = 'scoped memory for tile.8']
  %s0 = inlined_call_operand.vmem [shape: f32[32], index: 0, kind: input, shape index: {}]
  %s1 = inlined_call_operand.vmem [shape: f32[8,32], index: 1, kind: output, shape index: {}]
  // Predicated region
  $region2: #{tile.8} parent=0 // pred_check
    _
  $region3: #{tile.8} parent=0 // pred_check_branch
    %3 = sbr.rel (0) target = $region5
  $region4: #{tile.8} parent=0 // pred_region
    _
  $region5: #{tile.8} parent=0 // pred_fallthru
    _
  %v4 = vld [vmem:[%s0] ss:$0 sm:$0xff]
  %5 = vst [vmem:[%s1] sm:$0xff] %v4

// kernel: tile.9
$region0: #{tile.9}
  %s0 = inlined_call_operand.vmem [shape: f32[8,32], index: 0, kind: input, shape index: {}]
  %s1 = inlined_call_operand.vmem [shape: f32[1,256], index: 1, kind: output, shape index: {}]
  $region1: #{tile.9} parent=0
    #allocation0 [shape = 'u8[8192]{0}', space=vmem, size = 0x2000, scoped, tag = 'scoped mem for output reshape']
    %s2 = smov 3
    %v3 = vld [vmem:[%s0] ss:$4 sm:%s2]
    %vm4 = vcmask 261120
    %5 = vst.msk [vmem:[#allocation0] ss:$8 sm:$0x3] %vm4, %v3
    %s6 = scalar_lea.vmem %s0, 3
    %s7 = smov 3
    %v8 = vld [vmem:[%s6] ss:$4 sm:%s7]
    %9 = vrot.lane.b32.xlu0 %v8, 96
    %v10 = vpop.permute.xlu0 %9
    %vm11 = vcmask 1048320
    %12 = vst.msk [vmem:[#allocation0] ss:$8 sm:$0x3] %vm11, %v10
    %s13 = scalar_lea.vmem %s0, 2
    %s14 = smov 3
    %v15 = vld [vmem:[%s13] ss:$4 sm:%s14]
    %16 = vrot.lane.b32.xlu0 %v15, 64
    %v17 = vpop.permute.xlu0 %16
    %vm18 = vcmask 785920
    %19 = vst.msk [vmem:[#allocation0] ss:$8 sm:$0x3] %vm18, %v17
    %s20 = scalar_lea.vmem %s0, 1
    %s21 = smov 3
    %v22 = vld [vmem:[%s20] ss:$4 sm:%s21]
    %23 = vrot.lane.b32.xlu0 %v22, 32
    %v24 = vpop.permute.xlu0 %23
    %vm25 = vcmask 523520
    %26 = vst.msk [vmem:[#allocation0] ss:$8 sm:$0x3] %vm25, %v24
    %s28 = sshllo.u32 0, 1
    %v30 = vld [vmem:[#allocation0] sm:%s28]
    %s31 = sshllo.u32 0, 1
    %32 = vst [vmem:[%s1] sm:%s31] %v30
    %s33 = scalar_lea.vmem [#allocation0], 8
    %v34 = vld [vmem:[%s33] sm:%s28]
    %s35 = sshllo.u32 0, 1
    %s36 = scalar_lea.vmem %s1, 1
    %37 = vst [vmem:[%s36] sm:%s35] %v34

// kernel: value_net_forward.1
$region0: #{value_net_forward.1}
  #allocation0 [shape = 'u32[]', space=smem, size = 0x4, offset = 0x4, fixed_abs, tag = 'smem constant byte address 0x4 - core index']
  #allocation1 [shape = 'u32[144,128]{1,0:T(1,128)}', space=vmem, size = 0x12000, scoped, tag = 'internal scratch']
  #allocation2 [shape = 'f32[1,1]{1,0:T(1,128)S(6)}', space=smem, size = 0x200, scoped, tag = 'scoped memory for value_net_forward.1']
  %s0 = inlined_call_operand.vmem [shape: f32[25,128], index: 0, kind: input, shape index: {}]
  %s1 = inlined_call_operand.vmem [shape: f32[128,256], index: 1, kind: input, shape index: {}]
  %s2 = inlined_call_operand.vmem [shape: f32[1,256], index: 2, kind: input, shape index: {}]
  %s3 = inlined_call_operand.vmem [shape: f32[256,8], index: 3, kind: input, shape index: {}]
  %s4 = inlined_call_operand.<no memory space> [shape: f32[1,1], index: 4, kind: input, shape index: {}]
  %s5 = inlined_call_operand.vmem [shape: f32[32,8], index: 5, kind: output, shape index: {}]
  %s6 = sld [smem:[#allocation0]]
  $region53: #{value_net_forward.1} parent=0
    _
  %s8 = ssub.s32 1, %s6
  %s9 = scalar_select 0, %s8, %s6
  %10 = sst [smem:[#allocation2]] %s4
  loop: start=0, step=1, limit=4
  $region2: #{value_net_forward.1} parent=0 // loop_pre_header
    _
  $region3: #{value_net_forward.1} parent=0 // loop_header
    %s12 = sphi 0, %s16
    %p13 = scmp.ge.s32.totalorder %s12, 4
    %s22 = sphi 0, %s24
    %s25 = sphi 0, %s22
    %s26 = sphi 0, %s25
    %s42 = sphi 0, %s26
    %s46 = sphi 0, %s46
    %s48 = sphi 0, %s46
    %s49 = sphi 0, %s48
    %s63 = sphi 0, %s49
    %s67 = sphi 0, %s67
    %s69 = sphi 0, %s67
    %s70 = sphi 0, %s69
    %s84 = sphi 0, %s70
    %s88 = sphi 0, %s88
    %s90 = sphi 0, %s88
    %s91 = sphi 0, %s90
    %s105 = sphi 0, %s91
    %s109 = sphi 0, %s109
    %s111 = sphi 0, %s109
    %s112 = sphi 0, %s111
    %s126 = sphi 0, %s112
    %s132 = sphi 0, %s134
    %s135 = sphi 0, %s132
    %s136 = sphi 0, %s135
    %s152 = sphi 0, %s136
  $region4: #{value_net_forward.1} parent=0 // loop_header_branch
    %15 = sbr.rel (%p13) target = $region8
  $region5: #{value_net_forward.1} parent=0 // loop_body
    %s17 = ssub.s32 %s12, 1
    %s18 = ssub.s32 %s12, 2
    %s19 = sadd.s32 %s12, 1
    %s20 = ssub.s32 %s12, %s19
    %p21 = scmp.eq.s32.totalorder %s20, 0
    %s23 = sadd.s32 %s22, 1
    %s24 = scalar_select %p21, %s22, %s23
    %p27 = pneg %p21
    %p28 = scmp.eq.s32.totalorder %s12, 1
    %p29 = por %p27, %p28
    %p30 = scmp.ne.s32.totalorder %s22, %s25
    %p31 = scmp.eq.s32.totalorder %s12, 0
    %p32 = por %p30, %p31
    %p33 = scmp.ne.s32.totalorder %s22, %s25
    %p34 = scmp.eq.s32.totalorder %s17, 1
    %p35 = por %p33, %p34
    %p36 = scmp.ne.s32.totalorder %s25, %s26
    %p37 = scmp.eq.s32.totalorder %s17, 0
    %p38 = por %p36, %p37
    %p39 = scmp.ne.s32.totalorder %s25, %s26
    %p40 = scmp.eq.s32.totalorder %s18, 1
    %p41 = por %p39, %p40
    %p43 = scmp.ne.s32.totalorder %s26, %s42
    %p44 = scmp.eq.s32.totalorder %s18, 0
    %p45 = por %p43, %p44
    %s47 = sadd.s32 %s46, 1
    %p50 = scmp.eq.s32.totalorder %s12, 1
    %p51 = scmp.ne.s32.totalorder %s46, %s48
    %p52 = scmp.eq.s32.totalorder %s12, 0
    %p53 = por %p51, %p52
    %p54 = scmp.ne.s32.totalorder %s46, %s48
    %p55 = scmp.eq.s32.totalorder %s17, 1
    %p56 = por %p54, %p55
    %p57 = scmp.ne.s32.totalorder %s48, %s49
    %p58 = scmp.eq.s32.totalorder %s17, 0
    %p59 = por %p57, %p58
    %p60 = scmp.ne.s32.totalorder %s48, %s49
    %p61 = scmp.eq.s32.totalorder %s18, 1
    %p62 = por %p60, %p61
    %p64 = scmp.ne.s32.totalorder %s49, %s63
    %p65 = scmp.eq.s32.totalorder %s18, 0
    %p66 = por %p64, %p65
    %s68 = sadd.s32 %s67, 1
    %p71 = scmp.eq.s32.totalorder %s12, 1
    %p72 = scmp.ne.s32.totalorder %s67, %s69
    %p73 = scmp.eq.s32.totalorder %s12, 0
    %p74 = por %p72, %p73
    %p75 = scmp.ne.s32.totalorder %s67, %s69
    %p76 = scmp.eq.s32.totalorder %s17, 1
    %p77 = por %p75, %p76
    %p78 = scmp.ne.s32.totalorder %s69, %s70
    %p79 = scmp.eq.s32.totalorder %s17, 0
    %p80 = por %p78, %p79
    %p81 = scmp.ne.s32.totalorder %s69, %s70
    %p82 = scmp.eq.s32.totalorder %s18, 1
    %p83 = por %p81, %p82
    %p85 = scmp.ne.s32.totalorder %s70, %s84
    %p86 = scmp.eq.s32.totalorder %s18, 0
    %p87 = por %p85, %p86
    %s89 = sadd.s32 %s88, 1
    %p92 = scmp.eq.s32.totalorder %s12, 1
    %p93 = scmp.ne.s32.totalorder %s88, %s90
    %p94 = scmp.eq.s32.totalorder %s12, 0
    %p95 = por %p93, %p94
    %p96 = scmp.ne.s32.totalorder %s88, %s90
    %p97 = scmp.eq.s32.totalorder %s17, 1
    %p98 = por %p96, %p97
    %p99 = scmp.ne.s32.totalorder %s90, %s91
    %p100 = scmp.eq.s32.totalorder %s17, 0
    %p101 = por %p99, %p100
    %p102 = scmp.ne.s32.totalorder %s90, %s91
    %p103 = scmp.eq.s32.totalorder %s18, 1
    %p104 = por %p102, %p103
    %p106 = scmp.ne.s32.totalorder %s91, %s105
    %p107 = scmp.eq.s32.totalorder %s18, 0
    %p108 = por %p106, %p107
    %s110 = sadd.s32 %s109, 1
    %p113 = scmp.eq.s32.totalorder %s12, 1
    %p114 = scmp.ne.s32.totalorder %s109, %s111
    %p115 = scmp.eq.s32.totalorder %s12, 0
    %p116 = por %p114, %p115
    %p117 = scmp.ne.s32.totalorder %s109, %s111
    %p118 = scmp.eq.s32.totalorder %s17, 1
    %p119 = por %p117, %p118
    %p120 = scmp.ne.s32.totalorder %s111, %s112
    %p121 = scmp.eq.s32.totalorder %s17, 0
    %p122 = por %p120, %p121
    %p123 = scmp.ne.s32.totalorder %s111, %s112
    %p124 = scmp.eq.s32.totalorder %s18, 1
    %p125 = por %p123, %p124
    %p127 = scmp.ne.s32.totalorder %s112, %s126
    %p128 = scmp.eq.s32.totalorder %s18, 0
    %p129 = por %p127, %p128
    %s130 = ssub.s32 %s12, %s19
    %p131 = scmp.eq.s32.totalorder %s130, 0
    %s133 = sadd.s32 %s132, 1
    %s134 = scalar_select %p131, %s132, %s133
    %p137 = pneg %p131
    %p138 = scmp.eq.s32.totalorder %s12, 1
    %p139 = por %p137, %p138
    %p140 = scmp.ne.s32.totalorder %s132, %s135
    %p141 = scmp.eq.s32.totalorder %s12, 0
    %p142 = por %p140, %p141
    %p143 = scmp.ne.s32.totalorder %s132, %s135
    %p144 = scmp.eq.s32.totalorder %s17, 1
    %p145 = por %p143, %p144
    %p146 = scmp.ne.s32.totalorder %s135, %s136
    %p147 = scmp.eq.s32.totalorder %s17, 0
    %p148 = por %p146, %p147
    %p149 = scmp.ne.s32.totalorder %s135, %s136
    %p150 = scmp.eq.s32.totalorder %s18, 1
    %p151 = por %p149, %p150
    %p153 = scmp.ne.s32.totalorder %s136, %s152
    %p154 = scmp.eq.s32.totalorder %s18, 0
    %p155 = por %p153, %p154
    %p156 = scmp.le.s32.totalorder 1, %s12
    %p157 = scmp.lt.s32.totalorder %s12, 3
    %p158 = pnand %p156, %p157
    %p159 = pneg %p158
    // Predicated region
    $region9: #{value_net_forward.1} parent=5 // pred_check
      _
    $region10: #{value_net_forward.1} parent=5 // pred_check_branch
      %161 = sbr.rel (%p158) target = $region12
    $region11: #{value_net_forward.1} parent=5 // pred_region
      %s162 = ssub.s32 %s12, 1
      // Predicated region
      $region13: #{value_net_forward.1} parent=11 // pred_check
        %p163 = pneg %p59
      $region14: #{value_net_forward.1} parent=11 // pred_check_branch
        %165 = sbr.rel (%p163) target = $region16
      $region15: #{value_net_forward.1} parent=11 // pred_region
        _
      $region16: #{value_net_forward.1} parent=11 // pred_fallthru
        _
      // Predicated region
      $region17: #{value_net_forward.1} parent=11 // pred_check
        %p166 = pneg %p80
      $region18: #{value_net_forward.1} parent=11 // pred_check_branch
        %168 = sbr.rel (%p166) target = $region20
      $region19: #{value_net_forward.1} parent=11 // pred_region
        _
      $region20: #{value_net_forward.1} parent=11 // pred_fallthru
        _
      // Predicated region
      $region21: #{value_net_forward.1} parent=11 // pred_check
        %p169 = pneg %p101
      $region22: #{value_net_forward.1} parent=11 // pred_check_branch
        %171 = sbr.rel (%p169) target = $region24
      $region23: #{value_net_forward.1} parent=11 // pred_region
        _
      $region24: #{value_net_forward.1} parent=11 // pred_fallthru
        _
      // Predicated region
      $region25: #{value_net_forward.1} parent=11 // pred_check
        %p172 = pneg %p122
      $region26: #{value_net_forward.1} parent=11 // pred_check_branch
        %174 = sbr.rel (%p172) target = $region28
      $region27: #{value_net_forward.1} parent=11 // pred_region
        _
      $region28: #{value_net_forward.1} parent=11 // pred_fallthru
        _
    $region12: #{value_net_forward.1} parent=5 // pred_fallthru
      _
    %p175 = scmp.lt.s32.totalorder %s12, 2
    // Predicated region
    $region29: #{value_net_forward.1} parent=5 // pred_check
      %p176 = pneg %p175
    $region30: #{value_net_forward.1} parent=5 // pred_check_branch
      %178 = sbr.rel (%p176) target = $region32
    $region31: #{value_net_forward.1} parent=5 // pred_region
      // Predicated region
      $region33: #{value_net_forward.1} parent=31 // pred_check
        %p179 = pneg %p32
      $region34: #{value_net_forward.1} parent=31 // pred_check_branch
        %181 = sbr.rel (%p179) target = $region36
      $region35: #{value_net_forward.1} parent=31 // pred_region
        %s182 = smul.u32 2, %s12
        %p183 = scmp.lt.s32.totalorder %s182, 3
        %s184 = scalar_select %p183, %s182, 3
        %s185 = smul.addr %s184, 8
        %s186 = scalar_lea.vmem %s0, %s185
        %s187 = smul.u32 2, %s12
      $region36: #{value_net_forward.1} parent=31 // pred_fallthru
        _
    $region32: #{value_net_forward.1} parent=5 // pred_fallthru
      _
    %p188 = scmp.le.s32.totalorder 1, %s12
    %p189 = scmp.lt.s32.totalorder %s12, 3
    %p190 = pnand %p188, %p189
    %p191 = pneg %p190
    // Predicated region
    $region37: #{value_net_forward.1} parent=5 // pred_check
      _
    $region38: #{value_net_forward.1} parent=5 // pred_check_branch
      %193 = sbr.rel (%p190) target = $region40
    $region39: #{value_net_forward.1} parent=5 // pred_region
      %s194 = ssub.s32 %s12, 1
      %s195 = smul.u32 2, %s17
      %p196 = scmp.lt.s32.totalorder %s195, 3
      %s197 = scalar_select %p196, %s195, 3
      %s198 = smul.addr %s197, 8
      %s199 = scalar_lea.vmem %s0, %s198
      %p200 = pneg %p38
      %p201 = pneg %p35
      %p202 = pneg %p59
      %p203 = pneg %p56
      %p204 = pneg %p80
      %p205 = pneg %p77
      %p206 = pneg %p101
      %p207 = pneg %p98
      %p208 = pneg %p122
      %p209 = pneg %p119
      %p210 = pneg %p148
      %p211 = pneg %p145
      %s212 = smul.u32 2, %s17
      %p213 = scmp.lt.s32.totalorder %s212, 3
      %s214 = scalar_select %p213, %s212, 3
      %s215 = smul.addr %s214, 8
      %s216 = scalar_lea.vmem %s5, %s215
      %s217 = smul.u32 2, %s17
      %p218 = scmp.lt.s32.totalorder %s217, 3
      %s219 = scalar_select %p218, %s217, 3
      %s220 = smul.addr %s219, 8
      %s221 = scalar_lea.vmem %s0, %s220
      %s222 = smul.u32 2, %s17
      %s223 = smul.u32 2, %s17
      %p224 = scmp.lt.s32.totalorder %s223, 3
      %s225 = scalar_select %p224, %s223, 3
      %s226 = smul.addr %s225, 8
      %s227 = scalar_lea.vmem %s5, %s226
      %s228 = smul.u32 2, %s17
      %v229 = vld [vmem:[%s221] sm:$0xff]
      %v230 = vld [vmem:[%s221 + $0x8] sm:$0xff]
      %v231 = vld [vmem:[%s1] sm:$0xff]
      %v232 = vld [vmem:[%s1 + $0x8] sm:$0xff]
      %v233 = vld [vmem:[%s1 + $0x10] sm:$0xff]
      %v234 = vld [vmem:[%s1 + $0x18] sm:$0xff]
      %v235 = vld [vmem:[%s1 + $0x20] sm:$0xff]
      %v236 = vld [vmem:[%s1 + $0x28] sm:$0xff]
      %v237 = vld [vmem:[%s1 + $0x30] sm:$0xff]
      %v238 = vld [vmem:[%s1 + $0x38] sm:$0xff]
      %v239 = vld [vmem:[%s1 + $0x40] sm:$0xff]
      %v240 = vld [vmem:[%s1 + $0x48] sm:$0xff]
      %v241 = vld [vmem:[%s1 + $0x50] sm:$0xff]
      %v242 = vld [vmem:[%s1 + $0x58] sm:$0xff]
      %v243 = vld [vmem:[%s1 + $0x60] sm:$0xff]
      %v244 = vld [vmem:[%s1 + $0x68] sm:$0xff]
      %v245 = vld [vmem:[%s1 + $0x70] sm:$0xff]
      %v246 = vld [vmem:[%s1 + $0x78] sm:$0xff]
      %v247 = vld [vmem:[%s1 + $0x80] sm:$0xff]
      %v248 = vld [vmem:[%s1 + $0x88] sm:$0xff]
      %v249 = vld [vmem:[%s1 + $0x90] sm:$0xff]
      %v250 = vld [vmem:[%s1 + $0x98] sm:$0xff]
      %v251 = vld [vmem:[%s1 + $0xa0] sm:$0xff]
      %v252 = vld [vmem:[%s1 + $0xa8] sm:$0xff]
      %v253 = vld [vmem:[%s1 + $0xb0] sm:$0xff]
      %v254 = vld [vmem:[%s1 + $0xb8] sm:$0xff]
      %v255 = vld [vmem:[%s1 + $0xc0] sm:$0xff]
      %v256 = vld [vmem:[%s1 + $0xc8] sm:$0xff]
      %v257 = vld [vmem:[%s1 + $0xd0] sm:$0xff]
      %v258 = vld [vmem:[%s1 + $0xd8] sm:$0xff]
      %v259 = vld [vmem:[%s1 + $0xe0] sm:$0xff]
      %v260 = vld [vmem:[%s1 + $0xe8] sm:$0xff]
      %v261 = vld [vmem:[%s1 + $0xf0] sm:$0xff]
      %v262 = vld [vmem:[%s1 + $0xf8] sm:$0xff]
      %v263 = vld [vmem:[%s2] sm:$0x3]
      %v265 = vlaneseq
      %v266 = vshrl.u32 %v265, 7
      %v267 = vsub.s32 0, %v266
      %v268 = vrot.slane %v263, %v267
      %v269 = vlaneseq
      %v270 = vshrl.u32 %v269, 7
      %v271 = vsub.s32 1, %v270
      %v272 = vrot.slane %v263, %v271
      %275 = vmatprep.subr.mxu0 %v232
      %276 = vmatpush1.msra.mxu0 %v231
      %277 = vmatprep.subr.mxu0 %v234
      %278 = vmatpush1.msra.mxu0 %v233
      %279 = vmatprep.subr.mxu0 %v236
      %280 = vmatpush1.msra.mxu0 %v235
      %281 = vmatprep.subr.mxu0 %v238
      %282 = vmatpush1.msra.mxu0 %v237
      %283 = vmatprep.subr.mxu0 %v240
      %284 = vmatpush1.msra.mxu0 %v239
      %285 = vmatprep.subr.mxu0 %v242
      %286 = vmatpush1.msra.mxu0 %v241
      %287 = vmatprep.subr.mxu0 %v244
      %288 = vmatpush1.msra.mxu0 %v243
      %289 = vmatprep.subr.mxu0 %v246
      %290 = vmatpush1.msra.mxu0 %v245
      %291 = vmatprep.subr.mxu0 %v248
      %292 = vmatpush1.msra.mxu0 %v247
      %293 = vmatprep.subr.mxu0 %v250
      %294 = vmatpush1.msra.mxu0 %v249
      %295 = vmatprep.subr.mxu0 %v252
      %296 = vmatpush1.msra.mxu0 %v251
      %297 = vmatprep.subr.mxu0 %v254
      %298 = vmatpush1.msra.mxu0 %v253
      %299 = vmatprep.subr.mxu0 %v256
      %300 = vmatpush1.msra.mxu0 %v255
      %301 = vmatprep.subr.mxu0 %v258
      %302 = vmatpush1.msra.mxu0 %v257
      %303 = vmatprep.subr.mxu0 %v260
      %304 = vmatpush1.msra.mxu0 %v259
      %305 = vmatprep.subr.mxu0 %v262
      %306 = vmatpush1.msra.mxu0 %v261
      %307 = vmatprep.subr.mxu0 0.0
      %308 = vmatpush1.msra.mxu0 0.0
      %309 = vmatprep.subr.mxu0 0.0
      %310 = vmatpush1.msra.mxu0 0.0
      %311 = vmatprep.subr.mxu0 0.0
      %312 = vmatpush1.msra.mxu0 0.0
      %313 = vmatprep.subr.mxu0 0.0
      %314 = vmatpush1.msra.mxu0 0.0
      %315 = vmatprep.subr.mxu0 0.0
      %316 = vmatpush1.msra.mxu0 0.0
      %317 = vmatprep.subr.mxu0 0.0
      %318 = vmatpush1.msra.mxu0 0.0
      %319 = vmatprep.subr.mxu0 0.0
      %320 = vmatpush1.msra.mxu0 0.0
      %321 = vmatprep.subr.mxu0 0.0
      %322 = vmatpush1.msra.mxu0 0.0
      %323 = vmatprep.subr.mxu0 0.0
      %324 = vmatpush1.msra.mxu0 0.0
      %325 = vmatprep.subr.mxu0 0.0
      %326 = vmatpush1.msra.mxu0 0.0
      %327 = vmatprep.subr.mxu0 0.0
      %328 = vmatpush1.msra.mxu0 0.0
      %329 = vmatprep.subr.mxu0 0.0
      %330 = vmatpush1.msra.mxu0 0.0
      %331 = vmatprep.subr.mxu0 0.0
      %332 = vmatpush1.msra.mxu0 0.0
      %333 = vmatprep.subr.mxu0 0.0
      %334 = vmatpush1.msra.mxu0 0.0
      %335 = vmatprep.subr.mxu0 0.0
      %336 = vmatpush1.msra.mxu0 0.0
      %337 = vmatprep.subr.mxu0 0.0
      %338 = vmatpush1.msra.mxu0 0.0
      %339 = vmatprep.mubr.f32.mxu0 0.0
      %340 = vmatmul.mubr.f32.gmra.mrb[0].mxu0 %v229
      %v341 = vpop.f32.mrb[0].mxu0
      %v342 = vadd.f32 %v268, %v341
      %v343 = vpop.f32.mrb[0].mxu0
      %v344 = vadd.f32 %v272, %v343
      %345 = vmatprep.mubr.f32.mxu0 0.0
      %346 = vmatmul.mubr.f32.gmra.mrb[0].mxu0 %v230
      %v347 = vpop.f32.mrb[0].mxu0
      %v348 = vadd.f32 %v268, %v347
      %v349 = vpop.f32.mrb[0].mxu0
      %v350 = vadd.f32 %v272, %v349
      %351 = vdwg.mxu0
      %v352 = vmax.f32 %v342, 0.0
      %v353 = vmax.f32 %v344, 0.0
      %v354 = vmax.f32 %v348, 0.0
      %v355 = vmax.f32 %v350, 0.0
      %v356 = vld [vmem:[%s3] sm:$0xff]
      %v357 = vld [vmem:[%s3 + $0x8] sm:$0xff]
      %v358 = vld [vmem:[%s3 + $0x10] sm:$0xff]
      %v359 = vld [vmem:[%s3 + $0x18] sm:$0xff]
      %v360 = vld [vmem:[%s3 + $0x20] sm:$0xff]
      %v361 = vld [vmem:[%s3 + $0x28] sm:$0xff]
      %v362 = vld [vmem:[%s3 + $0x30] sm:$0xff]
      %v363 = vld [vmem:[%s3 + $0x38] sm:$0xff]
      %v364 = vld [vmem:[%s3 + $0x40] sm:$0xff]
      %v365 = vld [vmem:[%s3 + $0x48] sm:$0xff]
      %v366 = vld [vmem:[%s3 + $0x50] sm:$0xff]
      %v367 = vld [vmem:[%s3 + $0x58] sm:$0xff]
      %v368 = vld [vmem:[%s3 + $0x60] sm:$0xff]
      %v369 = vld [vmem:[%s3 + $0x68] sm:$0xff]
      %v370 = vld [vmem:[%s3 + $0x70] sm:$0xff]
      %v371 = vld [vmem:[%s3 + $0x78] sm:$0xff]
      %v372 = vld [vmem:[%s3 + $0x80] sm:$0xff]
      %v373 = vld [vmem:[%s3 + $0x88] sm:$0xff]
      %v374 = vld [vmem:[%s3 + $0x90] sm:$0xff]
      %v375 = vld [vmem:[%s3 + $0x98] sm:$0xff]
      %v376 = vld [vmem:[%s3 + $0xa0] sm:$0xff]
      %v377 = vld [vmem:[%s3 + $0xa8] sm:$0xff]
      %v378 = vld [vmem:[%s3 + $0xb0] sm:$0xff]
      %v379 = vld [vmem:[%s3 + $0xb8] sm:$0xff]
      %v380 = vld [vmem:[%s3 + $0xc0] sm:$0xff]
      %v381 = vld [vmem:[%s3 + $0xc8] sm:$0xff]
      %v382 = vld [vmem:[%s3 + $0xd0] sm:$0xff]
      %v383 = vld [vmem:[%s3 + $0xd8] sm:$0xff]
      %v384 = vld [vmem:[%s3 + $0xe0] sm:$0xff]
      %v385 = vld [vmem:[%s3 + $0xe8] sm:$0xff]
      %v386 = vld [vmem:[%s3 + $0xf0] sm:$0xff]
      %v387 = vld [vmem:[%s3 + $0xf8] sm:$0xff]
      %s388 = sld [smem:[#allocation2]]
      %v389 = vstv %s388
      %390 = vmatprep.subr.mxu0 0.0
      %391 = vmatpush1.msra.mxu0 %v356
      %392 = vmatprep.subr.mxu0 0.0
      %393 = vmatpush1.msra.mxu0 %v357
      %394 = vmatprep.subr.mxu0 0.0
      %395 = vmatpush1.msra.mxu0 %v358
      %396 = vmatprep.subr.mxu0 0.0
      %397 = vmatpush1.msra.mxu0 %v359
      %398 = vmatprep.subr.mxu0 0.0
      %399 = vmatpush1.msra.mxu0 %v360
      %400 = vmatprep.subr.mxu0 0.0
      %401 = vmatpush1.msra.mxu0 %v361
      %402 = vmatprep.subr.mxu0 0.0
      %403 = vmatpush1.msra.mxu0 %v362
      %404 = vmatprep.subr.mxu0 0.0
      %405 = vmatpush1.msra.mxu0 %v363
      %406 = vmatprep.subr.mxu0 0.0
      %407 = vmatpush1.msra.mxu0 %v364
      %408 = vmatprep.subr.mxu0 0.0
      %409 = vmatpush1.msra.mxu0 %v365
      %410 = vmatprep.subr.mxu0 0.0
      %411 = vmatpush1.msra.mxu0 %v366
      %412 = vmatprep.subr.mxu0 0.0
      %413 = vmatpush1.msra.mxu0 %v367
      %414 = vmatprep.subr.mxu0 0.0
      %415 = vmatpush1.msra.mxu0 %v368
      %416 = vmatprep.subr.mxu0 0.0
      %417 = vmatpush1.msra.mxu0 %v369
      %418 = vmatprep.subr.mxu0 0.0
      %419 = vmatpush1.msra.mxu0 %v370
      %420 = vmatprep.subr.mxu0 0.0
      %421 = vmatpush1.msra.mxu0 %v371
      %422 = vmatprep.subr.mxu0 0.0
      %423 = vmatpush1.msra.mxu0 %v372
      %424 = vmatprep.subr.mxu0 0.0
      %425 = vmatpush1.msra.mxu0 %v373
      %426 = vmatprep.subr.mxu0 0.0
      %427 = vmatpush1.msra.mxu0 %v374
      %428 = vmatprep.subr.mxu0 0.0
      %429 = vmatpush1.msra.mxu0 %v375
      %430 = vmatprep.subr.mxu0 0.0
      %431 = vmatpush1.msra.mxu0 %v376
      %432 = vmatprep.subr.mxu0 0.0
      %433 = vmatpush1.msra.mxu0 %v377
      %434 = vmatprep.subr.mxu0 0.0
      %435 = vmatpush1.msra.mxu0 %v378
      %436 = vmatprep.subr.mxu0 0.0
      %437 = vmatpush1.msra.mxu0 %v379
      %438 = vmatprep.subr.mxu0 0.0
      %439 = vmatpush1.msra.mxu0 %v380
      %440 = vmatprep.subr.mxu0 0.0
      %441 = vmatpush1.msra.mxu0 %v381
      %442 = vmatprep.subr.mxu0 0.0
      %443 = vmatpush1.msra.mxu0 %v382
      %444 = vmatprep.subr.mxu0 0.0
      %445 = vmatpush1.msra.mxu0 %v383
      %446 = vmatprep.subr.mxu0 0.0
      %447 = vmatpush1.msra.mxu0 %v384
      %448 = vmatprep.subr.mxu0 0.0
      %449 = vmatpush1.msra.mxu0 %v385
      %450 = vmatprep.subr.mxu0 0.0
      %451 = vmatpush1.msra.mxu0 %v386
      %452 = vmatprep.subr.mxu0 0.0
      %453 = vmatpush1.msra.mxu0 %v387
      %454 = vmatprep.mubr.f32.mxu0 %v353
      %455 = vmatmul.mubr.f32.gmra.mrb[0].mxu0 %v352
      %v456 = vpop.f32.mrb[0].mxu0
      %v457 = vadd.f32 %v389, %v456
      %v458 = vpop.f32.mrb[0].mxu0
      %459 = vmatprep.mubr.f32.mxu0 %v355
      %460 = vmatmul.mubr.f32.gmra.mrb[0].mxu0 %v354
      %v461 = vpop.f32.mrb[0].mxu0
      %v462 = vadd.f32 %v389, %v461
      %v463 = vpop.f32.mrb[0].mxu0
      %464 = vdwg.mxu0
      %vm465 = vcmask 64512
      %466 = vst.msk [vmem:[%s227] sm:$0xff] %vm465, %v457
      %467 = vst.msk [vmem:[%s227 + $0x8] sm:$0xff] %vm465, %v462
      %s468 = smul.u32 2, %s17
      %p469 = scmp.lt.s32.totalorder %s468, 3
      %s470 = scalar_select %p469, %s468, 3
      %s471 = smul.addr %s470, 8
      %s472 = scalar_lea.vmem %s5, %s471
      // Predicated region
      $region41: #{value_net_forward.1} parent=39 // pred_check
        %p473 = pneg %p145
      $region42: #{value_net_forward.1} parent=39 // pred_check_branch
        %475 = sbr.rel (%p473) target = $region44
      $region43: #{value_net_forward.1} parent=39 // pred_region
        %s476 = smul.u32 2, %s17
      $region44: #{value_net_forward.1} parent=39 // pred_fallthru
        _
    $region40: #{value_net_forward.1} parent=5 // pred_fallthru
      _
    %p477 = scmp.le.s32.totalorder 2, %s12
    // Predicated region
    $region45: #{value_net_forward.1} parent=5 // pred_check
      %p478 = pneg %p477
    $region46: #{value_net_forward.1} parent=5 // pred_check_branch
      %480 = sbr.rel (%p478) target = $region48
    $region47: #{value_net_forward.1} parent=5 // pred_region
      %s481 = ssub.s32 %s12, 2
      // Predicated region
      $region49: #{value_net_forward.1} parent=47 // pred_check
        %p482 = pneg %p151
      $region50: #{value_net_forward.1} parent=47 // pred_check_branch
        %484 = sbr.rel (%p482) target = $region52
      $region51: #{value_net_forward.1} parent=47 // pred_region
        %s485 = smul.u32 2, %s18
        %p486 = scmp.lt.s32.totalorder %s485, 3
        %s487 = scalar_select %p486, %s485, 3
        %s488 = smul.addr %s487, 8
        %s489 = scalar_lea.vmem %s5, %s488
      $region52: #{value_net_forward.1} parent=47 // pred_fallthru
        _
    $region48: #{value_net_forward.1} parent=5 // pred_fallthru
      _
  $region6: #{value_net_forward.1} parent=0 // loop_footer
    %s16 = sadd.s32 1, %s12
  $region7: #{value_net_forward.1} parent=0 // loop_footer_branch
    %11 = sbr.rel target = $region3
  $region8: #{value_net_forward.1} parent=0 // loop_exit
    _

</llo_original>
